<compile_context>
chip_gen: v5e
topology: v5e:2x2
jax: 0.10.0
libtpu: 0.0.40
codegen_flags: <defaults>
</compile_context>

<pallas_src>
import functools

import jax
import jax.numpy as jnp
from jax.experimental import pallas as pl
from jax.experimental.pallas import tpu as pltpu

LANES = 128
_TINY_ELEMS = 8 * LANES  # below this a kernel launch is not worth it


def _h_swish_kernel(x_ref, o_ref):
    x = x_ref[...]
    xf = x.astype(jnp.float32)              # f32 math: free (HBM-bound), exact /6
    hs = jnp.clip(xf + 3.0, 0.0, 6.0) / 6.0  # h_sigmoid = relu6(x + 3) / 6
    o_ref[...] = (xf * hs).astype(o_ref.dtype)


def _h_swish_jnp(x):
    # Plain-JAX path for tiny tensors and ragged (<128-multiple) element counts.
    # XLA's fused elementwise loop is already at the HBM roofline and avoids the
    # slice + concatenate copies a bulk/tail split would need.
    xf = x.astype(jnp.float32)
    return (xf * (jnp.clip(xf + 3.0, 0.0, 6.0) / 6.0)).astype(x.dtype)


def _round_up(n, m):
    return ((n + m - 1) // m) * m


@functools.lru_cache(maxsize=1)
def _gen_params():
    """Generation-aware block / VMEM sizing (trace-time hardware query)."""
    vmem_cap = 128 * 1024 * 1024
    try:
        info = pltpu.get_tpu_info()
        vmem_cap = int(getattr(info, "vmem_capacity_bytes", vmem_cap))
    except Exception:
        pass
    if vmem_cap <= 96 * 1024 * 1024:
        # v7x-class: 64 MiB VMEM per TensorCore, 2 TCs/chip, ~3.2 TB/s HBM.
        # 2 operands x 2 pipeline buffers x 8 MiB = 32 MiB < 40 MiB limit.
        return {
            "block_bytes": 8 << 20,
            "vmem_limit": 40 << 20,
            "min_blocks": 4,          # >= 2 grid steps per TensorCore
            "split_bytes": 256 << 10,  # split mid-size inputs above 256 KiB
        }
    # v5e / v6e: 128 MiB VMEM, single TensorCore.
    # 2 operands x 2 buffers x 16 MiB = 64 MiB < 80 MiB limit.
    return {
        "block_bytes": 16 << 20,
        "vmem_limit": 80 << 20,
        "min_blocks": 2,              # lets input/output DMA of adjacent steps overlap
        "split_bytes": 1 << 20,
    }


def h_swish(x: jax.Array, *, donate_input: bool = False) -> jax.Array:
    """Elementwise hard-swish on an NCHW (or any-shaped) array.

    `donate_input=True` adds input_output_aliases={0: 0}; only enable when the
    caller donates `x` (e.g. under jit with donate_argnums), otherwise XLA may
    insert a protective copy.
    """
    orig_shape = x.shape
    dtype = x.dtype
    total = x.size
    if total == 0:
        return x
    itemsize = jnp.dtype(dtype).itemsize

    flat = x.reshape(-1)  # contiguous -> free reshape, no copy

    if (total % LANES != 0) or (total < _TINY_ELEMS):
        # Ragged or tiny: one fused XLA elementwise pass (2N bytes of traffic),
        # strictly cheaper than any bulk-kernel + tail split.
        return _h_swish_jnp(flat).reshape(orig_shape)

    params = _gen_params()
    rows = total // LANES

    # Sublane granularity of the packed min-tile for this dtype:
    #   f32 -> 8, bf16/f16 -> 16, int8/fp8 -> 32.
    sub = max(8, 32 // max(1, itemsize))

    # Large, generation-aware tile: block_bytes of payload per operand, rounded
    # to the sublane packing so stores stay unmasked.
    target_rows = max(sub, (params["block_bytes"] // (LANES * itemsize)) // sub * sub)

    if rows <= target_rows:
        if (rows >= params["min_blocks"] * sub
                and rows * LANES * itemsize >= params["split_bytes"]):
            # Mid-size input: split so every TensorCore gets >= 2 grid steps
            # (v7x) and input/output DMAs of adjacent steps can overlap.
            tile_rows = _round_up(pl.cdiv(rows, params["min_blocks"]), sub)
        else:
            tile_rows = rows  # single block == full array dims (always legal)
    else:
        tile_rows = target_rows

    # A partial last block (tile_rows not dividing rows) is handled by Pallas
    # with masked stores -- no pad copy of the input is ever made.
    grid = (pl.cdiv(rows, tile_rows),)

    x2d = flat.reshape(rows, LANES)

    cost = pl.CostEstimate(
        flops=5 * total,
        transcendentals=0,
        bytes_accessed=2 * total * itemsize,
    )

    extra = {"input_output_aliases": {0: 0}} if donate_input else {}

    out2d = pl.pallas_call(
        _h_swish_kernel,
        out_shape=jax.ShapeDtypeStruct((rows, LANES), dtype),
        grid_spec=pltpu.PrefetchScalarGridSpec(
            num_scalar_prefetch=0,
            grid=grid,
            in_specs=[pl.BlockSpec((tile_rows, LANES), lambda i: (i, 0))],
            out_specs=pl.BlockSpec((tile_rows, LANES), lambda i: (i, 0)),
        ),
        compiler_params=pltpu.CompilerParams(
            dimension_semantics=("parallel",),
            vmem_limit_bytes=params["vmem_limit"],
        ),
        cost_estimate=cost,
        **extra,
    )(x2d)

    return out2d.reshape(orig_shape)


def _h_swish_ref(x):
    return x * (jnp.clip(x + 3.0, 0.0, 6.0) / 6.0)


if __name__ == "__main__":
    key = jax.random.PRNGKey(0)
    # NCHW input, matching a typical conv feature map.
    x = jax.random.normal(key, (2, 4, 16, 16), dtype=jnp.float32) * 4.0

    y = h_swish(x)
    y = jax.block_until_ready(y)

    y_ref = _h_swish_ref(x)
    assert y.shape == x.shape and y.dtype == x.dtype
    assert jnp.allclose(y, y_ref, atol=1e-6, rtol=1e-6), "mismatch vs reference"

    # Also exercise a ragged (non multiple-of-128) shape through the fallback.
    x2 = jax.random.normal(jax.random.PRNGKey(1), (3, 5, 7), dtype=jnp.float32)
    y2 = jax.block_until_ready(h_swish(x2))
    assert jnp.allclose(y2, _h_swish_ref(x2), atol=1e-6, rtol=1e-6)

    print("KERNEL_OK")
</pallas_src>

<mosaic_0001>
module attributes {stable_mosaic.version = 11 : i64} {
  func.func @_h_swish_kernel(%arg0: i32, %arg1: memref<16x128xf32, #tpu.memory_space<vmem>>, %arg2: memref<16x128xf32, #tpu.memory_space<vmem>>) attributes {dimension_semantics = [#tpu.dimension_semantics<parallel>], iteration_bounds = array<i64: 1>, scalar_prefetch = 0 : i64, scratch_operands = 0 : i64, tpu.core_type = #tpu.core_type<tc>, window_params = [{transform_indices = @transform_0, window_bounds = array<i64: 16, 128>}, {transform_indices = @transform_1, window_bounds = array<i64: 16, 128>}]} {
    %c0 = arith.constant 0 : index
    %c0_0 = arith.constant 0 : index
    %0 = vector.load %arg1[%c0, %c0_0] : memref<16x128xf32, #tpu.memory_space<vmem>>, vector<16x128xf32>
    %cst = arith.constant 3.000000e+00 : f32
    %1 = vector.broadcast %cst : f32 to vector<16x128xf32>
    %2 = arith.addf %0, %1 : vector<16x128xf32>
    %cst_1 = arith.constant 0.000000e+00 : f32
    %cst_2 = arith.constant 6.000000e+00 : f32
    %3 = vector.broadcast %cst_1 : f32 to vector<16x128xf32>
    %4 = arith.maximumf %3, %2 : vector<16x128xf32>
    %5 = vector.broadcast %cst_2 : f32 to vector<16x128xf32>
    %6 = arith.minimumf %5, %4 : vector<16x128xf32>
    %cst_3 = arith.constant 6.000000e+00 : f32
    %7 = vector.broadcast %cst_3 : f32 to vector<16x128xf32>
    %8 = arith.divf %6, %7 : vector<16x128xf32>
    %9 = arith.mulf %0, %8 : vector<16x128xf32>
    %c0_4 = arith.constant 0 : index
    %c0_5 = arith.constant 0 : index
    %10 = vector.load %arg2[%c0_4, %c0_5] : memref<16x128xf32, #tpu.memory_space<vmem>>, vector<16x128xf32>
    tpu.vector_store %arg2[%c0_4, %c0_5], %9 {strides = array<i32>} : memref<16x128xf32, #tpu.memory_space<vmem>>, vector<16x128xf32>,
    return
  }
  func.func @transform_0(%arg0: i32) -> (i32, i32) {
    %c0_i32 = arith.constant 0 : i32
    %c0_i32_0 = arith.constant 0 : i32
    return %arg0, %c0_i32 : i32, i32
  }
  func.func @transform_1(%arg0: i32) -> (i32, i32) {
    %c0_i32 = arith.constant 0 : i32
    %c0_i32_0 = arith.constant 0 : i32
    return %arg0, %c0_i32 : i32, i32
  }
}

</mosaic_0001>

<llo_original>
// kernel: tpu_custom_call.1
$region0: #{tpu_custom_call.1}
  #allocation0 [shape = 'u32[]', space=smem, size = 0x4, offset = 0x4, fixed_abs, tag = 'smem constant byte address 0x4 - core index']
  #allocation1 [shape = 'u32[72,128]{1,0:T(1,128)}', space=vmem, size = 0x9000, scoped, tag = 'internal scratch']
  %s0 = inlined_call_operand.hbm [shape: f32[16,128], index: 0, kind: input, shape index: {}]
  %s1 = inlined_call_operand.hbm [shape: f32[16,128], index: 1, kind: output, shape index: {}]
  %s2 = sld [smem:[#allocation0]]
  $region18: #{tpu_custom_call.1} parent=0
    _
  %s4 = ssub.s32 1, %s2
  %s5 = scalar_select 0, %s4, %s2
  $region1: #{tpu_custom_call.1} parent=0
    #allocation2 [shape = 'u8[8192]{0}', space=vmem, size = 0x2000, scoped, tag = 'input window, operand 0, single buffered']
    #allocation3 [shape = 's32[1]{0}', space=sflag, size = 0x4, scoped, tag = 'scoped memory for tpu_custom_call.1']
    #allocation4 [shape = 's32[1]{0}', space=sflag, size = 0x4, scoped, tag = 'scoped memory for tpu_custom_call.1']
    #allocation5 [shape = 'u8[8192]{0}', space=vmem, size = 0x2000, scoped, tag = 'output window, operand 0, single buffered']
    %6 = vsyncpa [#allocation3], 0
    %7 = vsyncpa [#allocation4], 0
    // Predicated region
    $region2: #{tpu_custom_call.1} parent=1 // pred_check
      _
    $region3: #{tpu_custom_call.1} parent=1 // pred_check_branch
      %9 = sbr.rel (0) target = $region5
    $region4: #{tpu_custom_call.1} parent=1 // pred_region
      %11 = vsyncadd [#allocation3], 0
      %s12 = sshll.u32 %s0, 4
      %s13 = int_to_ptr.hbm [resolvable:$true] %s12
      %s14 = sshll.u32 [#allocation2], 4
      %s15 = int_to_ptr.vmem [resolvable:$true] %s14
      %20 = dma.hbm_to_vmem [thread:$0]  %s13, 256, %s15, [#allocation3], 128, 128, 8
    $region5: #{tpu_custom_call.1} parent=1 // pred_fallthru
      _
    // Predicated region
    $region6: #{tpu_custom_call.1} parent=1 // pred_check
      _
    $region7: #{tpu_custom_call.1} parent=1 // pred_check_branch
      %22 = sbr.rel (0) target = $region9
    $region8: #{tpu_custom_call.1} parent=1 // pred_region
      %24 = dma.done [#allocation3], 256
    $region9: #{tpu_custom_call.1} parent=1 // pred_fallthru
      _
    %v25 = vld [vmem:[#allocation2] sm:$0xff]
    %v26 = vld [vmem:[#allocation2 + $0x8] sm:$0xff]
    %v27 = vadd.f32 %v25, 3.0
    %v28 = vadd.f32 %v26, 3.0
    %v29 = vmax.f32 %v27, 0.0
    %v30 = vmax.f32 %v28, 0.0
    %v31 = vmin.f32 %v29, 6.0
    %v32 = vmin.f32 %v30, 6.0
    %v33 = vrcp.pop 6.0
    %v34 = vmul.f32 6.0, %v33
    %v35 = vsub.f32 1.0, %v34
    %v36 = vmul.f32 %v33, %v35
    %v37 = vadd.f32 %v33, %v36
    %vm38 = vweird.f32 %v33
    %v39 = vsel %vm38, %v33, %v37
    %v40 = vmul.f32 %v31, %v39
    %v41 = vmul.f32 %v32, %v39
    %v42 = vmul.f32 %v25, %v40
    %v43 = vmul.f32 %v26, %v41
    %44 = vst [vmem:[#allocation5] sm:$0xff] %v42
    %45 = vst [vmem:[#allocation5 + $0x8] sm:$0xff] %v43
    // Predicated region
    $region10: #{tpu_custom_call.1} parent=1 // pred_check
      _
    $region11: #{tpu_custom_call.1} parent=1 // pred_check_branch
      %47 = sbr.rel (0) target = $region13
    $region12: #{tpu_custom_call.1} parent=1 // pred_region
      %49 = vsyncadd [#allocation4], 0
      %s50 = sshll.u32 [#allocation5], 4
      %s51 = int_to_ptr.vmem [resolvable:$true] %s50
      %s52 = sshll.u32 %s1, 4
      %s53 = int_to_ptr.hbm [resolvable:$true] %s52
      %58 = dma.vmem_to_hbm [thread:$0]  %s51, 256, %s53, [#allocation4], 128, 128, 8
    $region13: #{tpu_custom_call.1} parent=1 // pred_fallthru
      _
    // Predicated region
    $region14: #{tpu_custom_call.1} parent=1 // pred_check
      _
    $region15: #{tpu_custom_call.1} parent=1 // pred_check_branch
      %60 = sbr.rel (0) target = $region17
    $region16: #{tpu_custom_call.1} parent=1 // pred_region
      %62 = dma.done [#allocation4], 256
    $region17: #{tpu_custom_call.1} parent=1 // pred_fallthru
      _
    %63 = vsyncpa [#allocation3], 1
    %64 = vsyncpa [#allocation4], 1

</llo_original>
